<compile_context>
chip_gen: v5e
topology: v5e:2x2
jax: 0.10.0
libtpu: 0.0.40
codegen_flags: <defaults>
</compile_context>

<pallas_src>
import functools
import math

import jax
import jax.numpy as jnp
from jax import lax
from jax.experimental import pallas as pl
from jax.experimental.pallas import tpu as pltpu

# Explicit scoped-VMEM cap: above the 16 MiB (v5e) / 32 MiB (v6e, v7x) scoped
# defaults, below v7x's 64 MiB physical VMEM (v5e/v6e have 128 MiB physical).
_VMEM_LIMIT_BYTES = 48 * 1024 * 1024


def _pick_tile(dim, target, multiple=1):
    """Largest divisor of `dim` that is <= `target` and a multiple of `multiple`.

    Falls back to the full dimension (always a legal block shape) when no such
    divisor exists (e.g. lane dims smaller than 128).
    """
    t = min(dim, target)
    t -= t % multiple
    while t >= multiple:
        if dim % t == 0:
            return t
        t -= multiple
    return dim


# ----------------------------------------------------------------------------
# Tiled linear kernel:  y = x @ W_t + b   (W_t is the PyTorch weight transposed)
# ----------------------------------------------------------------------------
def _linear_kernel(x_ref, w_ref, b_ref, o_ref, acc_ref):
    @pl.when(pl.program_id(2) == 0)
    def _init():
        # Bias folded into the accumulator init: no epilogue add.
        acc_ref[...] = jnp.broadcast_to(b_ref[...].astype(jnp.float32),
                                        acc_ref.shape)

    acc_ref[...] += jnp.dot(x_ref[...], w_ref[...],
                            preferred_element_type=jnp.float32)

    @pl.when(pl.program_id(2) == pl.num_programs(2) - 1)
    def _finalize():
        o_ref[...] = acc_ref[...].astype(o_ref.dtype)


def linear_nt(x, w_t, b, *, out_dtype=None,
              m_tile=512, n_tile=512, k_tile=512):
    """x: (M, Din), w_t: (Din, Dout) pre-transposed, b: (Dout,) -> (M, Dout).

    Operands are consumed in whatever dtype they arrive in (cast OUTSIDE this
    wrapper for the bf16 fast path); accumulation is always f32.
    On v6e with bf16 operands, k_tile can be raised to 1024.
    """
    M, Kd = x.shape
    Kd2, N = w_t.shape
    assert Kd == Kd2
    b2 = b.reshape(1, N).astype(jnp.float32)
    out_dtype = out_dtype if out_dtype is not None else x.dtype

    tm = _pick_tile(M, m_tile, 8)       # sublane dim
    tn = _pick_tile(N, n_tile, 128)     # lane dim
    tk = _pick_tile(Kd, k_tile, 128)    # lane dim of x / sublane dim of w

    return pl.pallas_call(
        _linear_kernel,
        out_shape=jax.ShapeDtypeStruct((M, N), out_dtype),
        grid=(M // tm, N // tn, Kd // tk),          # reduction (K) axis last
        in_specs=[
            pl.BlockSpec((tm, tk), lambda i, j, kk: (i, kk)),
            pl.BlockSpec((tk, tn), lambda i, j, kk: (kk, j)),
            pl.BlockSpec((1, tn), lambda i, j, kk: (0, j)),
        ],
        out_specs=pl.BlockSpec((tm, tn), lambda i, j, kk: (i, j)),
        scratch_shapes=[pltpu.VMEM((tm, tn), jnp.float32)],
        compiler_params=pltpu.CompilerParams(
            dimension_semantics=("parallel", "parallel", "arbitrary"),
            vmem_limit_bytes=_VMEM_LIMIT_BYTES),
    )(x, w_t, b2)


# ----------------------------------------------------------------------------
# Fused QKV projection: one activation read, three separate (M, D) outputs
# (replaces the (M, 3D) matmul + jnp.split round trip).
# ----------------------------------------------------------------------------
def _fused_qkv_kernel(x_ref, w_ref, b_ref, qo_ref, ko_ref, vo_ref, acc_ref):
    @pl.when(pl.program_id(2) == 0)
    def _init():
        acc_ref[...] = jnp.broadcast_to(b_ref[...].astype(jnp.float32),
                                        acc_ref.shape)

    x = x_ref[...]                       # activation tile read ONCE per step
    for g in range(3):                   # q, k, v share the same x tile
        acc_ref[g] += jnp.dot(x, w_ref[g], preferred_element_type=jnp.float32)

    @pl.when(pl.program_id(2) == pl.num_programs(2) - 1)
    def _finalize():
        qo_ref[...] = acc_ref[0].astype(qo_ref.dtype)
        ko_ref[...] = acc_ref[1].astype(ko_ref.dtype)
        vo_ref[...] = acc_ref[2].astype(vo_ref.dtype)


def fused_qkv_proj(x, wqkv, bqkv, *, out_dtype=None,
                   m_tile=512, n_tile=512, k_tile=512):
    """x: (M, D), wqkv: (3, D, D) pre-transposed/stacked, bqkv: (3, 1, D).

    Returns (q, k, v), each (M, D), written directly by the kernel.
    """
    M, Kd = x.shape
    G, Kd2, N = wqkv.shape
    assert G == 3 and Kd == Kd2
    out_dtype = out_dtype if out_dtype is not None else x.dtype

    tm = _pick_tile(M, m_tile, 8)
    tn = _pick_tile(N, n_tile, 128)
    tk = _pick_tile(Kd, k_tile, 128)

    out_sds = jax.ShapeDtypeStruct((M, N), out_dtype)
    return pl.pallas_call(
        _fused_qkv_kernel,
        out_shape=(out_sds, out_sds, out_sds),
        grid=(M // tm, N // tn, Kd // tk),
        in_specs=[
            pl.BlockSpec((tm, tk), lambda i, j, kk: (i, kk)),
            pl.BlockSpec((3, tk, tn), lambda i, j, kk: (0, kk, j)),
            pl.BlockSpec((3, 1, tn), lambda i, j, kk: (0, 0, j)),
        ],
        out_specs=(
            pl.BlockSpec((tm, tn), lambda i, j, kk: (i, j)),
            pl.BlockSpec((tm, tn), lambda i, j, kk: (i, j)),
            pl.BlockSpec((tm, tn), lambda i, j, kk: (i, j)),
        ),
        scratch_shapes=[pltpu.VMEM((3, tm, tn), jnp.float32)],
        compiler_params=pltpu.CompilerParams(
            dimension_semantics=("parallel", "parallel", "arbitrary"),
            vmem_limit_bytes=_VMEM_LIMIT_BYTES),
    )(x, wqkv, bqkv)


# ----------------------------------------------------------------------------
# Flash-style multi-head attention, (B, S, D) layout, heads = lane slices of D
# ----------------------------------------------------------------------------
def _flash_attn_kernel(q_ref, k_ref, v_ref, o_ref, m_ref, l_ref, acc_ref, *,
                       num_heads, scale, approx_recip):
    kv_step = pl.program_id(2)

    @pl.when(kv_step == 0)
    def _init():
        m_ref[...] = jnp.full_like(m_ref, -jnp.inf)
        l_ref[...] = jnp.zeros_like(l_ref)
        acc_ref[...] = jnp.zeros_like(acc_ref)

    q = q_ref[0] * scale                 # (tq, D); 1/sqrt(dk) folded into Q
    k = k_ref[0]                         # (tkv, D)
    v = v_ref[0]                         # (tkv, D)
    d_k = q.shape[-1] // num_heads

    # Static head loop: all cross-iteration state lives in VMEM scratch refs
    # (m/l/acc), so each head's (tq, tkv) score tile is dead before the next
    # head starts (bounded live ranges without unrolled-SSA carries).
    for h in range(num_heads):
        sl = slice(h * d_k, (h + 1) * d_k)
        # scores = qh @ kh^T via dot_general contraction (no explicit transpose)
        s = lax.dot_general(q[:, sl], k[:, sl], (((1,), (1,)), ((), ())),
                            preferred_element_type=jnp.float32)       # (tq, tkv)
        m_prev = m_ref[h]                                             # (tq, 1)
        m_new = jnp.maximum(m_prev, jnp.max(s, axis=-1, keepdims=True))
        alpha = jnp.exp(m_prev - m_new)
        p = jnp.exp(s - m_new)                                        # f32 softmax
        l_ref[h] = alpha * l_ref[h] + jnp.sum(p, axis=-1, keepdims=True)
        m_ref[h] = m_new
        pv = jnp.dot(p.astype(v.dtype), v[:, sl],
                     preferred_element_type=jnp.float32)              # (tq, dk)
        acc_ref[:, sl] = alpha * acc_ref[:, sl] + pv

    @pl.when(kv_step == pl.num_programs(2) - 1)
    def _finalize():
        # Normalize each head, then a single lane-dense (tq, D) store.
        parts = []
        for h in range(num_heads):
            sl = slice(h * d_k, (h + 1) * d_k)
            if approx_recip:
                inv = pl.reciprocal(l_ref[h], approx=True)   # EUP slot (bf16 path)
            else:
                inv = 1.0 / l_ref[h]                         # exact path
            parts.append(acc_ref[:, sl] * inv)
        o_ref[0] = jnp.concatenate(parts, axis=-1).astype(o_ref.dtype)


def attention(q, k, v, num_heads, *, out_dtype=None, q_tile=256, kv_tile=512,
              approx_recip=False):
    """q: (B, Sq, D); k, v: (B, Skv, D) -> context (B, Sq, D), heads merged."""
    B, Sq, D = q.shape
    _, Skv, _ = k.shape
    assert D % num_heads == 0
    d_k = D // num_heads
    out_dtype = out_dtype if out_dtype is not None else q.dtype

    tq = _pick_tile(Sq, q_tile, 8)
    tkv = _pick_tile(Skv, kv_tile, 8)

    kern = functools.partial(_flash_attn_kernel, num_heads=num_heads,
                             scale=1.0 / math.sqrt(d_k),
                             approx_recip=approx_recip)
    return pl.pallas_call(
        kern,
        out_shape=jax.ShapeDtypeStruct((B, Sq, D), out_dtype),
        grid=(B, Sq // tq, Skv // tkv),              # KV (reduction) axis last
        in_specs=[
            pl.BlockSpec((1, tq, D), lambda b, i, j: (b, i, 0)),   # Q tile
            pl.BlockSpec((1, tkv, D), lambda b, i, j: (b, j, 0)),  # K tile
            pl.BlockSpec((1, tkv, D), lambda b, i, j: (b, j, 0)),  # V tile
        ],
        out_specs=pl.BlockSpec((1, tq, D), lambda b, i, j: (b, i, 0)),
        scratch_shapes=[
            pltpu.VMEM((num_heads, tq, 1), jnp.float32),   # running max per head
            pltpu.VMEM((num_heads, tq, 1), jnp.float32),   # running denom per head
            pltpu.VMEM((tq, D), jnp.float32),              # unnormalized context
        ],
        compiler_params=pltpu.CompilerParams(
            dimension_semantics=("parallel", "parallel", "arbitrary"),
            vmem_limit_bytes=_VMEM_LIMIT_BYTES),
    )(q, k, v)


# ----------------------------------------------------------------------------
# One-time weight preprocessing (hoisted out of the forward pass)
# ----------------------------------------------------------------------------
def prepare_params(params, compute_dtype=None):
    """Transpose weights to (Din, Dout), stack the QKV weights/biases, and cast
    the weights to the compute dtype once.  Call once; reuse across forwards."""
    wd = compute_dtype if compute_dtype is not None else params["wq"].dtype
    wq_t = params["wq"].T.astype(wd)
    wk_t = params["wk"].T.astype(wd)
    wv_t = params["wv"].T.astype(wd)
    wo_t = params["wo"].T.astype(wd)
    bqkv = jnp.stack([params["bq"], params["bk"], params["bv"]])
    return {
        "wqkv": jnp.stack([wq_t, wk_t, wv_t]),                  # (3, D, D)
        "bqkv": bqkv[:, None, :].astype(jnp.float32),           # (3, 1, D)
        "wq_t": wq_t, "wk_t": wk_t, "wv_t": wv_t, "wo_t": wo_t,
        "bq": params["bq"].astype(jnp.float32),
        "bk": params["bk"].astype(jnp.float32),
        "bv": params["bv"].astype(jnp.float32),
        "bo": params["bo"].astype(jnp.float32),
    }


# ----------------------------------------------------------------------------
# Full MultiHeadAttention forward
# ----------------------------------------------------------------------------
def mha_forward(Q, K, V, prepared, num_heads, *, compute_dtype=None,
                fuse_qkv=None):
    B, Sq, D = Q.shape
    Skv = K.shape[1]
    assert D % num_heads == 0
    out_dtype = Q.dtype
    inter_dtype = compute_dtype if compute_dtype is not None else Q.dtype

    if fuse_qkv is None:
        # Identity-based self-attention detection (equal-but-distinct arrays
        # take the unfused path; pass fuse_qkv=True explicitly to override).
        fuse_qkv = (Q is K) and (K is V)

    # Cast activations OUTSIDE the kernels so all kernel DMAs move bf16 bytes.
    if compute_dtype is not None:
        Qc = Q.astype(compute_dtype)
        Kc = Qc if K is Q else K.astype(compute_dtype)
        Vc = Qc if V is Q else (Kc if V is K else V.astype(compute_dtype))
    else:
        Qc, Kc, Vc = Q, K, V

    if fuse_qkv:
        q2, k2, v2 = fused_qkv_proj(Qc.reshape(B * Sq, D), prepared["wqkv"],
                                    prepared["bqkv"], out_dtype=inter_dtype)
        q = q2.reshape(B, Sq, D)
        k = k2.reshape(B, Sq, D)
        v = v2.reshape(B, Sq, D)
    else:
        q = linear_nt(Qc.reshape(B * Sq, D), prepared["wq_t"], prepared["bq"],
                      out_dtype=inter_dtype).reshape(B, Sq, D)
        k = linear_nt(Kc.reshape(B * Skv, D), prepared["wk_t"], prepared["bk"],
                      out_dtype=inter_dtype).reshape(B, Skv, D)
        v = linear_nt(Vc.reshape(B * Skv, D), prepared["wv_t"], prepared["bv"],
                      out_dtype=inter_dtype).reshape(B, Skv, D)

    # Heads live as contiguous D-slices inside the flash-attention kernel:
    # no split/merge transposes, lane-dense (last dim = D) input and output.
    ctx = attention(q, k, v, num_heads, out_dtype=inter_dtype,
                    approx_recip=(compute_dtype is not None))

    out = linear_nt(ctx.reshape(B * Sq, D), prepared["wo_t"], prepared["bo"],
                    out_dtype=out_dtype)
    return out.reshape(B, Sq, D)


# ----------------------------------------------------------------------------
# Pure-JAX reference (mirrors the PyTorch module exactly)
# ----------------------------------------------------------------------------
def mha_reference(Q, K, V, params, num_heads):
    B, S, D = Q.shape
    d_k = D // num_heads

    def lin(x, w, b):
        return x @ w.T + b

    q = lin(Q, params["wq"], params["bq"]).reshape(B, -1, num_heads, d_k).transpose(0, 2, 1, 3)
    k = lin(K, params["wk"], params["bk"]).reshape(B, -1, num_heads, d_k).transpose(0, 2, 1, 3)
    v = lin(V, params["wv"], params["bv"]).reshape(B, -1, num_heads, d_k).transpose(0, 2, 1, 3)
    scores = jnp.einsum("bhqd,bhkd->bhqk", q, k) / math.sqrt(d_k)
    probs = jax.nn.softmax(scores, axis=-1)
    ctx = jnp.einsum("bhqk,bhkd->bhqd", probs, v)
    ctx = ctx.transpose(0, 2, 1, 3).reshape(B, -1, D)
    return lin(ctx, params["wo"], params["bo"])


# ----------------------------------------------------------------------------
# Deterministic parameter init (PyTorch nn.Linear style uniform(-1/sqrt(d), ..))
# ----------------------------------------------------------------------------
def init_params(key, d_model):
    bound = 1.0 / math.sqrt(d_model)
    keys = jax.random.split(key, 8)

    def u(k, shape):
        return jax.random.uniform(k, shape, jnp.float32, -bound, bound)

    return {
        "wq": u(keys[0], (d_model, d_model)), "bq": u(keys[1], (d_model,)),
        "wk": u(keys[2], (d_model, d_model)), "bk": u(keys[3], (d_model,)),
        "wv": u(keys[4], (d_model, d_model)), "bv": u(keys[5], (d_model,)),
        "wo": u(keys[6], (d_model, d_model)), "bo": u(keys[7], (d_model,)),
    }


if __name__ == "__main__":
    batch, seq, d_model, num_heads = 2, 8, 32, 4

    root = jax.random.PRNGKey(0)
    kq, kk, kv, kx, kp = jax.random.split(root, 5)
    params = init_params(kp, d_model)

    # One-time weight preprocessing (hoisted out of the forward pass).
    prepared_f32 = prepare_params(params)
    prepared_bf16 = prepare_params(params, jnp.bfloat16)

    # 1) Self-attention (Q = K = V): exercises the fused-QKV projection path.
    x = jax.random.normal(kx, (batch, seq, d_model), jnp.float32)
    out_self = jax.block_until_ready(mha_forward(x, x, x, prepared_f32, num_heads))
    ref_self = mha_reference(x, x, x, params, num_heads)
    assert out_self.shape == (batch, seq, d_model)
    assert jnp.allclose(out_self, ref_self, atol=1e-4, rtol=1e-4), "self-attn mismatch"

    # 2) Distinct Q, K, V (cross-attention style): exercises separate projections.
    Q = jax.random.normal(kq, (batch, seq, d_model), jnp.float32)
    K = jax.random.normal(kk, (batch, seq, d_model), jnp.float32)
    V = jax.random.normal(kv, (batch, seq, d_model), jnp.float32)
    out_gen = jax.block_until_ready(mha_forward(Q, K, V, prepared_f32, num_heads))
    ref_gen = mha_reference(Q, K, V, params, num_heads)
    assert jnp.allclose(out_gen, ref_gen, atol=1e-4, rtol=1e-4), "cross-attn mismatch"

    # 3) bf16 MXU operands (v6e/v7x fast path): f32 accumulation/softmax,
    #    bf16 intermediates end-to-end, looser tolerance.
    out_bf16 = jax.block_until_ready(
        mha_forward(x, x, x, prepared_bf16, num_heads, compute_dtype=jnp.bfloat16))
    assert jnp.allclose(out_bf16, ref_self, atol=5e-2, rtol=5e-2), "bf16 path mismatch"

    print("KERNEL_OK")
</pallas_src>

<mosaic_0001>
module attributes {stable_mosaic.version = 11 : i64} {
  func.func @_fused_qkv_kernel(%arg0: i32, %arg1: i32, %arg2: i32, %arg3: memref<16x32xf32, #tpu.memory_space<vmem>>, %arg4: memref<3x32x32xf32, #tpu.memory_space<vmem>>, %arg5: memref<3x1x32xf32, #tpu.memory_space<vmem>>, %arg6: memref<16x32xf32, #tpu.memory_space<vmem>>, %arg7: memref<16x32xf32, #tpu.memory_space<vmem>>, %arg8: memref<16x32xf32, #tpu.memory_space<vmem>>, %arg9: memref<3x16x32xf32, #tpu.memory_space<vmem>>) attributes {dimension_semantics = [#tpu.dimension_semantics<parallel>, #tpu.dimension_semantics<parallel>, #tpu.dimension_semantics<arbitrary>], iteration_bounds = array<i64: 1, 1, 1>, scalar_prefetch = 0 : i64, scratch_operands = 1 : i64, tpu.core_type = #tpu.core_type<tc>, window_params = [{transform_indices = @transform_0, window_bounds = array<i64: 16, 32>}, {transform_indices = @transform_1, window_bounds = array<i64: 3, 32, 32>}, {transform_indices = @transform_2, window_bounds = array<i64: 3, 1, 32>}, {transform_indices = @transform_3, window_bounds = array<i64: 16, 32>}, {transform_indices = @transform_4, window_bounds = array<i64: 16, 32>}, {transform_indices = @transform_5, window_bounds = array<i64: 16, 32>}]} {
    %c0_i32 = arith.constant 0 : i32
    %0 = arith.cmpi eq, %arg2, %c0_i32 : i32
    %1 = arith.extui %0 : i1 to i32
    %c0_i32_0 = arith.constant 0 : i32
    %2 = arith.cmpi ne, %1, %c0_i32_0 : i32
    scf.if %2 {
      %c0_31 = arith.constant 0 : index
      %c0_32 = arith.constant 0 : index
      %c0_33 = arith.constant 0 : index
      %34 = vector.load %arg5[%c0_31, %c0_32, %c0_33] : memref<3x1x32xf32, #tpu.memory_space<vmem>>, vector<3x1x32xf32>
      %35 = vector.shape_cast %34 : vector<3x1x32xf32> to vector<3x1x32xf32>
      %36 = vector.broadcast %35 : vector<3x1x32xf32> to vector<3x16x32xf32>
      %c0_34 = arith.constant 0 : index
      %c0_35 = arith.constant 0 : index
      %c0_36 = arith.constant 0 : index
      %37 = vector.load %arg9[%c0_34, %c0_35, %c0_36] : memref<3x16x32xf32, #tpu.memory_space<vmem>>, vector<3x16x32xf32>
      tpu.vector_store %arg9[%c0_34, %c0_35, %c0_36], %36 {strides = array<i32>} : memref<3x16x32xf32, #tpu.memory_space<vmem>>, vector<3x16x32xf32>,
    } else {
    }
    %c0 = arith.constant 0 : index
    %c0_1 = arith.constant 0 : index
    %3 = vector.load %arg3[%c0, %c0_1] : memref<16x32xf32, #tpu.memory_space<vmem>>, vector<16x32xf32>
    %c0_2 = arith.constant 0 : index
    %c0_3 = arith.constant 0 : index
    %c0_4 = arith.constant 0 : index
    %4 = vector.load %arg9[%c0_2, %c0_3, %c0_4] : memref<3x16x32xf32, #tpu.memory_space<vmem>>, vector<1x16x32xf32>
    %5 = vector.shape_cast %4 : vector<1x16x32xf32> to vector<16x32xf32>
    %c0_5 = arith.constant 0 : index
    %c0_6 = arith.constant 0 : index
    %c0_7 = arith.constant 0 : index
    %6 = vector.load %arg4[%c0_5, %c0_6, %c0_7] : memref<3x32x32xf32, #tpu.memory_space<vmem>>, vector<1x32x32xf32>
    %7 = vector.shape_cast %6 : vector<1x32x32xf32> to vector<32x32xf32>
    %cst = arith.constant dense<0.000000e+00> : vector<16x32xf32>
    %8 = tpu.matmul %3, %7, %cst {dimension_numbers = #tpu.dot_dimension_numbers<[1], [0], [0], [1], [0, 0, 1, 1], [], []>} : vector<16x32xf32>, vector<32x32xf32>, vector<16x32xf32> -> vector<16x32xf32>
    %9 = arith.addf %5, %8 : vector<16x32xf32>
    %c0_8 = arith.constant 0 : index
    %c0_9 = arith.constant 0 : index
    %c0_10 = arith.constant 0 : index
    %10 = vector.load %arg9[%c0_8, %c0_9, %c0_10] : memref<3x16x32xf32, #tpu.memory_space<vmem>>, vector<1x16x32xf32>
    %11 = vector.shape_cast %10 : vector<1x16x32xf32> to vector<16x32xf32>
    %12 = vector.shape_cast %9 : vector<16x32xf32> to vector<1x16x32xf32>
    tpu.vector_store %arg9[%c0_8, %c0_9, %c0_10], %12 {strides = array<i32>} : memref<3x16x32xf32, #tpu.memory_space<vmem>>, vector<1x16x32xf32>,
    %c1 = arith.constant 1 : index
    %c0_11 = arith.constant 0 : index
    %c0_12 = arith.constant 0 : index
    %13 = vector.load %arg9[%c1, %c0_11, %c0_12] : memref<3x16x32xf32, #tpu.memory_space<vmem>>, vector<1x16x32xf32>
    %14 = vector.shape_cast %13 : vector<1x16x32xf32> to vector<16x32xf32>
    %c1_13 = arith.constant 1 : index
    %c0_14 = arith.constant 0 : index
    %c0_15 = arith.constant 0 : index
    %15 = vector.load %arg4[%c1_13, %c0_14, %c0_15] : memref<3x32x32xf32, #tpu.memory_space<vmem>>, vector<1x32x32xf32>
    %16 = vector.shape_cast %15 : vector<1x32x32xf32> to vector<32x32xf32>
    %cst_16 = arith.constant dense<0.000000e+00> : vector<16x32xf32>
    %17 = tpu.matmul %3, %16, %cst_16 {dimension_numbers = #tpu.dot_dimension_numbers<[1], [0], [0], [1], [0, 0, 1, 1], [], []>} : vector<16x32xf32>, vector<32x32xf32>, vector<16x32xf32> -> vector<16x32xf32>
    %18 = arith.addf %14, %17 : vector<16x32xf32>
    %c1_17 = arith.constant 1 : index
    %c0_18 = arith.constant 0 : index
    %c0_19 = arith.constant 0 : index
    %19 = vector.load %arg9[%c1_17, %c0_18, %c0_19] : memref<3x16x32xf32, #tpu.memory_space<vmem>>, vector<1x16x32xf32>
    %20 = vector.shape_cast %19 : vector<1x16x32xf32> to vector<16x32xf32>
    %21 = vector.shape_cast %18 : vector<16x32xf32> to vector<1x16x32xf32>
    tpu.vector_store %arg9[%c1_17, %c0_18, %c0_19], %21 {strides = array<i32>} : memref<3x16x32xf32, #tpu.memory_space<vmem>>, vector<1x16x32xf32>,
    %c2 = arith.constant 2 : index
    %c0_20 = arith.constant 0 : index
    %c0_21 = arith.constant 0 : index
    %22 = vector.load %arg9[%c2, %c0_20, %c0_21] : memref<3x16x32xf32, #tpu.memory_space<vmem>>, vector<1x16x32xf32>
    %23 = vector.shape_cast %22 : vector<1x16x32xf32> to vector<16x32xf32>
    %c2_22 = arith.constant 2 : index
    %c0_23 = arith.constant 0 : index
    %c0_24 = arith.constant 0 : index
    %24 = vector.load %arg4[%c2_22, %c0_23, %c0_24] : memref<3x32x32xf32, #tpu.memory_space<vmem>>, vector<1x32x32xf32>
    %25 = vector.shape_cast %24 : vector<1x32x32xf32> to vector<32x32xf32>
    %cst_25 = arith.constant dense<0.000000e+00> : vector<16x32xf32>
    %26 = tpu.matmul %3, %25, %cst_25 {dimension_numbers = #tpu.dot_dimension_numbers<[1], [0], [0], [1], [0, 0, 1, 1], [], []>} : vector<16x32xf32>, vector<32x32xf32>, vector<16x32xf32> -> vector<16x32xf32>
    %27 = arith.addf %23, %26 : vector<16x32xf32>
    %c2_26 = arith.constant 2 : index
    %c0_27 = arith.constant 0 : index
    %c0_28 = arith.constant 0 : index
    %28 = vector.load %arg9[%c2_26, %c0_27, %c0_28] : memref<3x16x32xf32, #tpu.memory_space<vmem>>, vector<1x16x32xf32>
    %29 = vector.shape_cast %28 : vector<1x16x32xf32> to vector<16x32xf32>
    %30 = vector.shape_cast %27 : vector<16x32xf32> to vector<1x16x32xf32>
    tpu.vector_store %arg9[%c2_26, %c0_27, %c0_28], %30 {strides = array<i32>} : memref<3x16x32xf32, #tpu.memory_space<vmem>>, vector<1x16x32xf32>,
    %c0_i32_29 = arith.constant 0 : i32
    %31 = arith.cmpi eq, %arg2, %c0_i32_29 : i32
    %32 = arith.extui %31 : i1 to i32
    %c0_i32_30 = arith.constant 0 : i32
    %33 = arith.cmpi ne, %32, %c0_i32_30 : i32
    scf.if %33 {
      %c0_31 = arith.constant 0 : index
      %c0_32 = arith.constant 0 : index
      %c0_33 = arith.constant 0 : index
      %34 = vector.load %arg9[%c0_31, %c0_32, %c0_33] : memref<3x16x32xf32, #tpu.memory_space<vmem>>, vector<1x16x32xf32>
      %35 = vector.shape_cast %34 : vector<1x16x32xf32> to vector<16x32xf32>
      %c0_34 = arith.constant 0 : index
      %c0_35 = arith.constant 0 : index
      %36 = vector.load %arg6[%c0_34, %c0_35] : memref<16x32xf32, #tpu.memory_space<vmem>>, vector<16x32xf32>
      tpu.vector_store %arg6[%c0_34, %c0_35], %35 {strides = array<i32>} : memref<16x32xf32, #tpu.memory_space<vmem>>, vector<16x32xf32>,
      %c1_36 = arith.constant 1 : index
      %c0_37 = arith.constant 0 : index
      %c0_38 = arith.constant 0 : index
      %37 = vector.load %arg9[%c1_36, %c0_37, %c0_38] : memref<3x16x32xf32, #tpu.memory_space<vmem>>, vector<1x16x32xf32>
      %38 = vector.shape_cast %37 : vector<1x16x32xf32> to vector<16x32xf32>
      %c0_39 = arith.constant 0 : index
      %c0_40 = arith.constant 0 : index
      %39 = vector.load %arg7[%c0_39, %c0_40] : memref<16x32xf32, #tpu.memory_space<vmem>>, vector<16x32xf32>
      tpu.vector_store %arg7[%c0_39, %c0_40], %38 {strides = array<i32>} : memref<16x32xf32, #tpu.memory_space<vmem>>, vector<16x32xf32>,
      %c2_41 = arith.constant 2 : index
      %c0_42 = arith.constant 0 : index
      %c0_43 = arith.constant 0 : index
      %40 = vector.load %arg9[%c2_41, %c0_42, %c0_43] : memref<3x16x32xf32, #tpu.memory_space<vmem>>, vector<1x16x32xf32>
      %41 = vector.shape_cast %40 : vector<1x16x32xf32> to vector<16x32xf32>
      %c0_44 = arith.constant 0 : index
      %c0_45 = arith.constant 0 : index
      %42 = vector.load %arg8[%c0_44, %c0_45] : memref<16x32xf32, #tpu.memory_space<vmem>>, vector<16x32xf32>
      tpu.vector_store %arg8[%c0_44, %c0_45], %41 {strides = array<i32>} : memref<16x32xf32, #tpu.memory_space<vmem>>, vector<16x32xf32>,
    } else {
    }
    return
  }
  func.func @transform_0(%arg0: i32, %arg1: i32, %arg2: i32) -> (i32, i32) {
    %c0_i32 = arith.constant 0 : i32
    return %arg0, %arg2 : i32, i32
  }
  func.func @transform_1(%arg0: i32, %arg1: i32, %arg2: i32) -> (i32, i32, i32) {
    %c0_i32 = arith.constant 0 : i32
    %c0_i32_0 = arith.constant 0 : i32
    return %c0_i32, %arg2, %arg1 : i32, i32, i32
  }
  func.func @transform_2(%arg0: i32, %arg1: i32, %arg2: i32) -> (i32, i32, i32) {
    %c0_i32 = arith.constant 0 : i32
    %c0_i32_0 = arith.constant 0 : i32
    %c0_i32_1 = arith.constant 0 : i32
    return %c0_i32, %c0_i32_0, %arg1 : i32, i32, i32
  }
  func.func @transform_3(%arg0: i32, %arg1: i32, %arg2: i32) -> (i32, i32) {
    %c0_i32 = arith.constant 0 : i32
    return %arg0, %arg1 : i32, i32
  }
  func.func @transform_4(%arg0: i32, %arg1: i32, %arg2: i32) -> (i32, i32) {
    %c0_i32 = arith.constant 0 : i32
    return %arg0, %arg1 : i32, i32
  }
  func.func @transform_5(%arg0: i32, %arg1: i32, %arg2: i32) -> (i32, i32) {
    %c0_i32 = arith.constant 0 : i32
    return %arg0, %arg1 : i32, i32
  }
}

</mosaic_0001>

<llo_original>
// kernel: tpu_custom_call.1
$region0: #{tpu_custom_call.1}
  #allocation0 [shape = 'u32[]', space=smem, size = 0x4, offset = 0x4, fixed_abs, tag = 'smem constant byte address 0x4 - core index']
  #allocation1 [shape = 'u32[72,128]{1,0:T(1,128)}', space=vmem, size = 0x9000, scoped, tag = 'internal scratch']
  #allocation2 [shape = 'f32[3,16,32]{2,1,0:T(8,128)}', space=vmem, size = 0x6000, scoped, tag = 'scratch operand']
  %s0 = inlined_call_operand.hbm [shape: f32[16,32], index: 0, kind: input, shape index: {}]
  %s1 = inlined_call_operand.hbm [shape: f32[3,32,32], index: 1, kind: input, shape index: {}]
  %s2 = inlined_call_operand.hbm [shape: f32[3,1,32], index: 2, kind: input, shape index: {}]
  %s3 = inlined_call_operand.hbm [shape: f32[16,32], index: 3, kind: output, shape index: {0}]
  %s4 = inlined_call_operand.hbm [shape: f32[16,32], index: 4, kind: output, shape index: {1}]
  %s5 = inlined_call_operand.hbm [shape: f32[16,32], index: 5, kind: output, shape index: {2}]
  %6 = xla_tuple %s3, %s4, %s5
  %s7 = sld [smem:[#allocation0]]
  $region58: #{tpu_custom_call.1} parent=0
    _
  %s9 = ssub.s32 1, %s7
  %s10 = scalar_select 0, %s9, %s7
  $region1: #{tpu_custom_call.1} parent=0
    #allocation3 [shape = 'u8[8192]{0}', space=vmem, size = 0x2000, scoped, tag = 'input window, operand 0, single buffered']
    #allocation4 [shape = 's32[1]{0}', space=sflag, size = 0x4, scoped, tag = 'scoped memory for tpu_custom_call.1']
    #allocation5 [shape = 's32[1]{0}', space=sflag, size = 0x4, scoped, tag = 'scoped memory for tpu_custom_call.1']
    #allocation6 [shape = 'u8[49152]{0}', space=vmem, size = 0xc000, scoped, tag = 'input window, operand 1, single buffered']
    #allocation7 [shape = 's32[1]{0}', space=sflag, size = 0x4, scoped, tag = 'scoped memory for tpu_custom_call.1']
    #allocation8 [shape = 'u8[1536]{0}', space=vmem, size = 0x800, scoped, tag = 'input window, operand 2, single buffered']
    #allocation9 [shape = 'u8[8192]{0}', space=vmem, size = 0x2000, scoped, tag = 'output window, operand 0, single buffered']
    #allocation10 [shape = 'u8[8192]{0}', space=vmem, size = 0x2000, scoped, tag = 'output window, operand 1, single buffered']
    #allocation11 [shape = 's32[1]{0}', space=sflag, size = 0x4, scoped, tag = 'scoped memory for tpu_custom_call.1']
    #allocation12 [shape = 'u8[8192]{0}', space=vmem, size = 0x2000, scoped, tag = 'output window, operand 2, single buffered']
    %11 = vsyncpa [#allocation4], 0
    %12 = vsyncpa [#allocation7], 0
    %13 = vsyncpa [#allocation5], 0
    %14 = vsyncpa [#allocation11], 0
    // Predicated region
    $region2: #{tpu_custom_call.1} parent=1 // pred_check
      _
    $region3: #{tpu_custom_call.1} parent=1 // pred_check_branch
      %16 = sbr.rel (0) target = $region5
    $region4: #{tpu_custom_call.1} parent=1 // pred_region
      %18 = vsyncadd [#allocation4], 0
      %s19 = sshll.u32 %s0, 4
      %s20 = int_to_ptr.hbm [resolvable:$true] %s19
      %s21 = sshll.u32 [#allocation3], 4
      %s22 = int_to_ptr.vmem [resolvable:$true] %s21
      %27 = dma.hbm_to_vmem [thread:$0]  %s20, 256, %s22, [#allocation4], 128, 128, 8
    $region5: #{tpu_custom_call.1} parent=1 // pred_fallthru
      _
    // Predicated region
    $region6: #{tpu_custom_call.1} parent=1 // pred_check
      _
    $region7: #{tpu_custom_call.1} parent=1 // pred_check_branch
      %29 = sbr.rel (0) target = $region9
    $region8: #{tpu_custom_call.1} parent=1 // pred_region
      %31 = vsyncadd [#allocation7], 0
      %s32 = sshll.u32 %s1, 4
      %s33 = int_to_ptr.hbm [resolvable:$true] %s32
      %s34 = sshll.u32 [#allocation6], 4
      %s35 = int_to_ptr.vmem [resolvable:$true] %s34
      %40 = dma.hbm_to_vmem [thread:$0]  %s33, 1536, %s35, [#allocation7], 128, 128, 8
    $region9: #{tpu_custom_call.1} parent=1 // pred_fallthru
      _
    // Predicated region
    $region10: #{tpu_custom_call.1} parent=1 // pred_check
      _
    $region11: #{tpu_custom_call.1} parent=1 // pred_check_branch
      %42 = sbr.rel (0) target = $region13
    $region12: #{tpu_custom_call.1} parent=1 // pred_region
      %44 = vsyncadd [#allocation7], 0
      %s45 = sshll.u32 %s2, 4
      %s46 = int_to_ptr.hbm [resolvable:$true] %s45
      %s47 = sshll.u32 [#allocation8], 4
      %s48 = int_to_ptr.vmem [resolvable:$true] %s47
      %53 = dma.hbm_to_vmem [thread:$0]  %s46, 48, %s48, [#allocation7], 16, 16, 1
    $region13: #{tpu_custom_call.1} parent=1 // pred_fallthru
      _
    // Predicated region
    $region14: #{tpu_custom_call.1} parent=1 // pred_check
      _
    $region15: #{tpu_custom_call.1} parent=1 // pred_check_branch
      %55 = sbr.rel (0) target = $region17
    $region16: #{tpu_custom_call.1} parent=1 // pred_region
      %57 = dma.done [#allocation4], 256
    $region17: #{tpu_custom_call.1} parent=1 // pred_fallthru
      _
    // Predicated region
    $region18: #{tpu_custom_call.1} parent=1 // pred_check
      _
    $region19: #{tpu_custom_call.1} parent=1 // pred_check_branch
      %59 = sbr.rel (0) target = $region21
    $region20: #{tpu_custom_call.1} parent=1 // pred_region
      %61 = dma.done [#allocation7], 1536
    $region21: #{tpu_custom_call.1} parent=1 // pred_fallthru
      _
    // Predicated region
    $region22: #{tpu_custom_call.1} parent=1 // pred_check
      _
    $region23: #{tpu_custom_call.1} parent=1 // pred_check_branch
      %63 = sbr.rel (0) target = $region25
    $region24: #{tpu_custom_call.1} parent=1 // pred_region
      %65 = dma.done [#allocation7], 48
    $region25: #{tpu_custom_call.1} parent=1 // pred_fallthru
      _
    %p66 = scmp.eq.s32.totalorder 0, 0
    // Predicated region
    $region26: #{tpu_custom_call.1} parent=1 // pred_check
      %p67 = pneg %p66
    $region27: #{tpu_custom_call.1} parent=1 // pred_check_branch
      %69 = sbr.rel (%p67) target = $region29
    $region28: #{tpu_custom_call.1} parent=1 // pred_region
      %v70 = vld [vmem:[#allocation8] sm:$0x1]
      %v71 = vld [vmem:[#allocation8 + $0x1] sm:$0x1]
      %v72 = vld [vmem:[#allocation8 + $0x2] sm:$0x1]
      %v76 = vperm.slane %v70, 0
      %v77 = vperm.slane %v71, 0
      %v78 = vperm.slane %v72, 0
      %vm82 = vcmask 261120
      %83 = vst.msk [vmem:[#allocation2] sm:$0xff] %vm82, %v76
      %84 = vst.msk [vmem:[#allocation2 + $0x8] sm:$0xff] %vm82, %v76
      %85 = vst.msk [vmem:[#allocation2 + $0x10] sm:$0xff] %vm82, %v77
      %86 = vst.msk [vmem:[#allocation2 + $0x18] sm:$0xff] %vm82, %v77
      %87 = vst.msk [vmem:[#allocation2 + $0x20] sm:$0xff] %vm82, %v78
      %88 = vst.msk [vmem:[#allocation2 + $0x28] sm:$0xff] %vm82, %v78
    $region29: #{tpu_custom_call.1} parent=1 // pred_fallthru
      _
    %v89 = vld [vmem:[#allocation3] sm:$0xff]
    %v90 = vld [vmem:[#allocation3 + $0x8] sm:$0xff]
    %v91 = vld [vmem:[#allocation2] sm:$0xff]
    %v92 = vld [vmem:[#allocation2 + $0x8] sm:$0xff]
    %v93 = vld [vmem:[#allocation6] sm:$0xff]
    %v94 = vld [vmem:[#allocation6 + $0x8] sm:$0xff]
    %v95 = vld [vmem:[#allocation6 + $0x10] sm:$0xff]
    %v96 = vld [vmem:[#allocation6 + $0x18] sm:$0xff]
    %vm97 = vcmask 261120
    %v99 = vsel %vm97, %v89, 0
    %v102 = vsel %vm97, %v90, 0
    %104 = vmatpush.msra.mxu0 0.0
    %105 = vmatpush.msra.mxu0 0.0
    %106 = vmatpush.msra.mxu0 0.0
    %107 = vmatpush.msra.mxu0 0.0
    %108 = vmatpush.msra.mxu0 0.0
    %109 = vmatpush.msra.mxu0 0.0
    %110 = vmatpush.msra.mxu0 0.0
    %111 = vmatpush.msra.mxu0 0.0
    %112 = vmatpush.msra.mxu0 0.0
    %113 = vmatpush.msra.mxu0 0.0
    %114 = vmatpush.msra.mxu0 0.0
    %115 = vmatpush.msra.mxu0 0.0
    %116 = vmatpush.msra.mxu0 %v96
    %117 = vmatpush.msra.mxu0 %v95
    %118 = vmatpush.msra.mxu0 %v94
    %119 = vmatpush.msra.mxu0 %v93
    %120 = vmatmul.f32.gmra.mxu0 %v99
    %v121 = vpop.f32.mrf.mxu0
    %v122 = vadd.f32 0.0, %v121
    %123 = vmatmul.f32.gmra.mxu0 %v102
    %v124 = vpop.f32.mrf.mxu0
    %v125 = vadd.f32 0.0, %v124
    %126 = vdwg.mxu0
    %v127 = vadd.f32 %v91, %v122
    %v128 = vadd.f32 %v92, %v125
    %129 = vst.msk [vmem:[#allocation2] sm:$0xff] %vm97, %v127
    %130 = vst.msk [vmem:[#allocation2 + $0x8] sm:$0xff] %vm97, %v128
    %s131 = scalar_lea.vmem [#allocation2], 16
    %v132 = vld [vmem:[%s131] sm:$0xff]
    %v133 = vld [vmem:[%s131 + $0x8] sm:$0xff]
    %s134 = scalar_lea.vmem [#allocation6], 32
    %v135 = vld [vmem:[%s134] sm:$0xff]
    %v136 = vld [vmem:[%s134 + $0x8] sm:$0xff]
    %v137 = vld [vmem:[%s134 + $0x10] sm:$0xff]
    %v138 = vld [vmem:[%s134 + $0x18] sm:$0xff]
    %139 = vmatpush.msra.mxu0 0.0
    %140 = vmatpush.msra.mxu0 0.0
    %141 = vmatpush.msra.mxu0 0.0
    %142 = vmatpush.msra.mxu0 0.0
    %143 = vmatpush.msra.mxu0 0.0
    %144 = vmatpush.msra.mxu0 0.0
    %145 = vmatpush.msra.mxu0 0.0
    %146 = vmatpush.msra.mxu0 0.0
    %147 = vmatpush.msra.mxu0 0.0
    %148 = vmatpush.msra.mxu0 0.0
    %149 = vmatpush.msra.mxu0 0.0
    %150 = vmatpush.msra.mxu0 0.0
    %151 = vmatpush.msra.mxu0 %v138
    %152 = vmatpush.msra.mxu0 %v137
    %153 = vmatpush.msra.mxu0 %v136
    %154 = vmatpush.msra.mxu0 %v135
    %155 = vmatmul.f32.gmra.mxu0 %v99
    %v156 = vpop.f32.mrf.mxu0
    %v157 = vadd.f32 0.0, %v156
    %158 = vmatmul.f32.gmra.mxu0 %v102
    %v159 = vpop.f32.mrf.mxu0
    %v160 = vadd.f32 0.0, %v159
    %161 = vdwg.mxu0
    %v162 = vadd.f32 %v132, %v157
    %v163 = vadd.f32 %v133, %v160
    %164 = vst.msk [vmem:[%s131] sm:$0xff] %vm97, %v162
    %165 = vst.msk [vmem:[%s131 + $0x8] sm:$0xff] %vm97, %v163
    %s166 = scalar_lea.vmem [#allocation2], 32
    %v167 = vld [vmem:[%s166] sm:$0xff]
    %v168 = vld [vmem:[%s166 + $0x8] sm:$0xff]
    %s169 = scalar_lea.vmem [#allocation6], 64
    %v170 = vld [vmem:[%s169] sm:$0xff]
    %v171 = vld [vmem:[%s169 + $0x8] sm:$0xff]
    %v172 = vld [vmem:[%s169 + $0x10] sm:$0xff]
    %v173 = vld [vmem:[%s169 + $0x18] sm:$0xff]
    %174 = vmatpush.msra.mxu0 0.0
    %175 = vmatpush.msra.mxu0 0.0
    %176 = vmatpush.msra.mxu0 0.0
    %177 = vmatpush.msra.mxu0 0.0
    %178 = vmatpush.msra.mxu0 0.0
    %179 = vmatpush.msra.mxu0 0.0
    %180 = vmatpush.msra.mxu0 0.0
    %181 = vmatpush.msra.mxu0 0.0
    %182 = vmatpush.msra.mxu0 0.0
    %183 = vmatpush.msra.mxu0 0.0
    %184 = vmatpush.msra.mxu0 0.0
    %185 = vmatpush.msra.mxu0 0.0
    %186 = vmatpush.msra.mxu0 %v173
    %187 = vmatpush.msra.mxu0 %v172
    %188 = vmatpush.msra.mxu0 %v171
    %189 = vmatpush.msra.mxu0 %v170
    %190 = vmatmul.f32.gmra.mxu0 %v99
    %v191 = vpop.f32.mrf.mxu0
    %v192 = vadd.f32 0.0, %v191
    %193 = vmatmul.f32.gmra.mxu0 %v102
    %v194 = vpop.f32.mrf.mxu0
    %v195 = vadd.f32 0.0, %v194
    %196 = vdwg.mxu0
    %v197 = vadd.f32 %v167, %v192
    %v198 = vadd.f32 %v168, %v195
    %199 = vst.msk [vmem:[%s166] sm:$0xff] %vm97, %v197
    %200 = vst.msk [vmem:[%s166 + $0x8] sm:$0xff] %vm97, %v198
    // Predicated region
    $region30: #{tpu_custom_call.1} parent=1 // pred_check
      %p201 = pneg %p66
    $region31: #{tpu_custom_call.1} parent=1 // pred_check_branch
      %203 = sbr.rel (%p201) target = $region33
    $region32: #{tpu_custom_call.1} parent=1 // pred_region
      %v204 = vld [vmem:[#allocation2] sm:$0xff]
      %v205 = vld [vmem:[#allocation2 + $0x8] sm:$0xff]
      %206 = vst.msk [vmem:[#allocation9] sm:$0xff] %vm97, %v204
      %207 = vst.msk [vmem:[#allocation9 + $0x8] sm:$0xff] %vm97, %v205
      %v208 = vld [vmem:[%s131] sm:$0xff]
      %v209 = vld [vmem:[%s131 + $0x8] sm:$0xff]
      %210 = vst.msk [vmem:[#allocation10] sm:$0xff] %vm97, %v208
      %211 = vst.msk [vmem:[#allocation10 + $0x8] sm:$0xff] %vm97, %v209
      %v212 = vld [vmem:[%s166] sm:$0xff]
      %v213 = vld [vmem:[%s166 + $0x8] sm:$0xff]
      %214 = vst.msk [vmem:[#allocation12] sm:$0xff] %vm97, %v212
      %215 = vst.msk [vmem:[#allocation12 + $0x8] sm:$0xff] %vm97, %v213
    $region33: #{tpu_custom_call.1} parent=1 // pred_fallthru
      _
    // Predicated region
    $region34: #{tpu_custom_call.1} parent=1 // pred_check
      _
    $region35: #{tpu_custom_call.1} parent=1 // pred_check_branch
      %217 = sbr.rel (0) target = $region37
    $region36: #{tpu_custom_call.1} parent=1 // pred_region
      %219 = vsyncadd [#allocation5], 0
      %s220 = sshll.u32 [#allocation9], 4
      %s221 = int_to_ptr.vmem [resolvable:$true] %s220
      %s222 = sshll.u32 %s3, 4
      %s223 = int_to_ptr.hbm [resolvable:$true] %s222
      %228 = dma.vmem_to_hbm [thread:$0]  %s221, 256, %s223, [#allocation5], 128, 128, 8
    $region37: #{tpu_custom_call.1} parent=1 // pred_fallthru
      _
    // Predicated region
    $region38: #{tpu_custom_call.1} parent=1 // pred_check
      _
    $region39: #{tpu_custom_call.1} parent=1 // pred_check_branch
      %230 = sbr.rel (0) target = $region41
    $region40: #{tpu_custom_call.1} parent=1 // pred_region
      %232 = vsyncadd [#allocation11], 0
      %s233 = sshll.u32 [#allocation10], 4
      %s234 = int_to_ptr.vmem [resolvable:$true] %s233
      %s235 = sshll.u32 %s4, 4
      %s236 = int_to_ptr.hbm [resolvable:$true] %s235
      %241 = dma.vmem_to_hbm [thread:$0]  %s234, 256, %s236, [#allocation11], 128, 128, 8
    $region41: #{tpu_custom_call.1} parent=1 // pred_fallthru
      _
    // Predicated region
    $region42: #{tpu_custom_call.1} parent=1 // pred_check
      _
    $region43: #{tpu_custom_call.1} parent=1 // pred_check_branch
      %243 = sbr.rel (0) target = $region45
    $region44: #{tpu_custom_call.1} parent=1 // pred_region
      %245 = vsyncadd [#allocation11], 0
      %s246 = sshll.u32 [#allocation12], 4
      %s247 = int_to_ptr.vmem [resolvable:$true] %s246
      %s248 = sshll.u32 %s5, 4
      %s249 = int_to_ptr.hbm [resolvable:$true] %s248
      %254 = dma.vmem_to_hbm [thread:$0]  %s247, 256, %s249, [#allocation11], 128, 128, 8
    $region45: #{tpu_custom_call.1} parent=1 // pred_fallthru
      _
    // Predicated region
    $region46: #{tpu_custom_call.1} parent=1 // pred_check
      _
    $region47: #{tpu_custom_call.1} parent=1 // pred_check_branch
      %256 = sbr.rel (0) target = $region49
    $region48: #{tpu_custom_call.1} parent=1 // pred_region
      %258 = dma.done [#allocation5], 256
    $region49: #{tpu_custom_call.1} parent=1 // pred_fallthru
      _
    // Predicated region
    $region50: #{tpu_custom_call.1} parent=1 // pred_check
      _
    $region51: #{tpu_custom_call.1} parent=1 // pred_check_branch
      %260 = sbr.rel (0) target = $region53
    $region52: #{tpu_custom_call.1} parent=1 // pred_region
      %262 = dma.done [#allocation11], 256
    $region53: #{tpu_custom_call.1} parent=1 // pred_fallthru
      _
    // Predicated region
    $region54: #{tpu_custom_call.1} parent=1 // pred_check
      _
    $region55: #{tpu_custom_call.1} parent=1 // pred_check_branch
      %264 = sbr.rel (0) target = $region57
    $region56: #{tpu_custom_call.1} parent=1 // pred_region
      %266 = dma.done [#allocation11], 256
    $region57: #{tpu_custom_call.1} parent=1 // pred_fallthru
      _
    %267 = vsyncpa [#allocation4], 1
    %268 = vsyncpa [#allocation7], 1
    %269 = vsyncpa [#allocation5], 1
    %270 = vsyncpa [#allocation11], 1

</llo_original>
